<compile_context>
chip_gen: v7x
topology: tpu7x:2x2x1
jax: 0.10.0
libtpu: 0.0.40
codegen_flags: <defaults>
</compile_context>

<pallas_src>
import jax
import jax.numpy as jnp
from jax.experimental import pallas as pl
from jax.experimental.pallas import tpu as pltpu


# ----------------------------------------------------------------------------
# Pallas kernel: LSTM recurrence + output head (Linear + Softmax/Sigmoid)
# ----------------------------------------------------------------------------
def _make_lstm_head_kernel(seq_len: int, batch_padded: int, num_class: int):
    use_softmax = num_class > 2
    T, Bp = seq_len, batch_padded

    def kernel(x_ref, wih_ref, whh_ref, b_ref, wout_ref, bout_ref, out_ref):
        # x_ref    : [T*Bp, F]   bf16  (time-major, batch sublane-padded to 8)
        # wih_ref  : [F, 4H]     bf16  (W_ih^T, gate order i,f,o,g)
        # whh_ref  : [H, 4H]     bf16  (W_hh^T, gate order i,f,o,g)
        # b_ref    : [1, 4H]     f32   (b_ih + b_hh, gate order i,f,o,g)
        # wout_ref : [H, Cp]     bf16  (W_out^T, lane-padded to 128 cols)
        # bout_ref : [1, Cp]     f32   (padded cols = -1e30 -> masked in softmax)
        # out_ref  : [T*Bp, Cp]  f32
        H = whh_ref.shape[0]

        # ---- prologue: batched input projection, bias folded in (one MXU op) ----
        gates_x = (
            jnp.dot(x_ref[...], wih_ref[...], preferred_element_type=jnp.float32)
            + b_ref[...]
        )                                                    # [T*Bp, 4H] f32

        whh = whh_ref[...]                                   # bf16 [H, 4H], loop-invariant

        # ---- recurrence: fully unrolled; only h @ W_hh stays on the serial path ----
        c = jnp.zeros((Bp, H), jnp.float32)
        h_bf = None
        h_steps = []                                         # hidden states stay in vregs
        for t in range(T):
            g_slice = gates_x[t * Bp:(t + 1) * Bp, :]        # exactly one (8,128) vreg
            if t == 0:
                gates = g_slice                              # h0 == 0 -> skip matmul
            else:
                gates = g_slice + jnp.dot(
                    h_bf, whh, preferred_element_type=jnp.float32
                )                                            # [Bp, 4H] f32
            # gate order (i, f, o, g): one wide sigmoid + one tanh per step
            sig = jax.nn.sigmoid(gates[:, :3 * H])
            g_g = jnp.tanh(gates[:, 3 * H:])
            i_g = sig[:, 0:H]
            f_g = sig[:, H:2 * H]
            o_g = sig[:, 2 * H:3 * H]
            c = f_g * c + i_g * g_g                          # f32 cell math
            h = o_g * jnp.tanh(c)                            # f32 hidden
            h_bf = h.astype(whh.dtype)                       # bf16 for next matmul + head
            h_steps.append(h_bf)

        # ---- epilogue: one batched output matmul + one exact softmax + one store ----
        h_all = jnp.concatenate(h_steps, axis=0)             # [T*Bp, H] bf16 (register-resident)
        logits = (
            jnp.dot(h_all, wout_ref[...], preferred_element_type=jnp.float32)
            + bout_ref[...]
        )                                                     # [T*Bp, Cp] f32
        if use_softmax:
            m = jnp.max(logits, axis=-1, keepdims=True)
            e = jnp.exp(logits - m)                           # padded cols -> exp(-huge) = 0
            denom = jnp.sum(e, axis=-1, keepdims=True)
            probs = e / denom                                 # exact (one-shot epilogue)
        else:
            probs = jax.nn.sigmoid(logits)
        out_ref[...] = probs                                  # lane-dense, unmasked store

    return kernel


# ----------------------------------------------------------------------------
# Wrapper: layout/dtype plumbing + pallas_call
# ----------------------------------------------------------------------------
def _reorder_gates_ifog(a):
    """PyTorch LSTM gate-block order (i, f, g, o) -> (i, f, o, g) along axis 0."""
    i_, f_, g_, o_ = jnp.split(a, 4, axis=0)
    return jnp.concatenate([i_, f_, o_, g_], axis=0)


def recurrent_nn_forward(x, params, num_class):
    """x: [B, T, F] (batch_first, like the PyTorch module). Returns [B, T, C].

    Matches RecurrentNN.forward with inter_num=0. The trailing float64 cast
    mirrors `output.to(torch.float64)`; it yields true float64 only when the
    caller has enabled jax_enable_x64.
    """
    w_ih, w_hh, b_ih, b_hh, w_out, b_out = params
    B, T, F = x.shape
    H = w_hh.shape[1]
    C = w_out.shape[0]

    Bp = ((B + 7) // 8) * 8 if B > 8 else 8          # sublane-pad batch to 8
    Cp = ((C + 127) // 128) * 128 if C > 128 else 128  # lane-dense output width

    # glue (plain JAX): batch pad, time-major flatten, gate reorder, transposes,
    # bf16 MXU inputs, output-head lane padding.
    x_f32 = x.astype(jnp.float32)                                        # x.to(float32)
    x_pad = jnp.pad(x_f32, ((0, Bp - B), (0, 0), (0, 0)))                # [Bp, T, F]
    x_flat = jnp.transpose(x_pad, (1, 0, 2)).reshape(T * Bp, F).astype(jnp.bfloat16)

    wih_t = jnp.transpose(_reorder_gates_ifog(w_ih.astype(jnp.float32))).astype(jnp.bfloat16)  # [F, 4H]
    whh_t = jnp.transpose(_reorder_gates_ifog(w_hh.astype(jnp.float32))).astype(jnp.bfloat16)  # [H, 4H]
    b = _reorder_gates_ifog(
        (b_ih.astype(jnp.float32) + b_hh.astype(jnp.float32))
    ).reshape(1, 4 * H)                                                   # [1, 4H] f32

    wout_t = jnp.transpose(w_out).astype(jnp.bfloat16)                    # [H, C]
    wout_t = jnp.pad(wout_t, ((0, 0), (0, Cp - C)))                       # [H, Cp]
    bout = jnp.full((1, Cp), -1e30, jnp.float32)
    bout = bout.at[0, :C].set(b_out.astype(jnp.float32))                  # [1, Cp]

    kernel = _make_lstm_head_kernel(T, Bp, num_class)
    out_flat = pl.pallas_call(
        kernel,
        out_shape=jax.ShapeDtypeStruct((T * Bp, Cp), jnp.float32),
        in_specs=[pl.BlockSpec(memory_space=pltpu.MemorySpace.VMEM)] * 6,
        out_specs=pl.BlockSpec(memory_space=pltpu.MemorySpace.VMEM),
    )(x_flat, wih_t, whh_t, b, wout_t, bout)

    out = out_flat.reshape(T, Bp, Cp)[:, :B, :C]                          # drop padding
    out = jnp.transpose(out, (1, 0, 2))                                   # [B, T, C]
    return out.astype(jnp.float64)                                        # .to(float64)


# ----------------------------------------------------------------------------
# Deterministic parameter init (PyTorch-style U(-1/sqrt(H), 1/sqrt(H)))
# ----------------------------------------------------------------------------
def init_params(key, num_feature, num_class, n_hidden):
    k = 1.0 / jnp.sqrt(jnp.float32(n_hidden))
    ks = jax.random.split(key, 6)
    w_ih = jax.random.uniform(ks[0], (4 * n_hidden, num_feature), jnp.float32, -k, k)
    w_hh = jax.random.uniform(ks[1], (4 * n_hidden, n_hidden), jnp.float32, -k, k)
    b_ih = jax.random.uniform(ks[2], (4 * n_hidden,), jnp.float32, -k, k)
    b_hh = jax.random.uniform(ks[3], (4 * n_hidden,), jnp.float32, -k, k)
    w_out = jax.random.uniform(ks[4], (num_class, n_hidden), jnp.float32, -k, k)
    b_out = jax.random.uniform(ks[5], (num_class,), jnp.float32, -k, k)
    return (w_ih, w_hh, b_ih, b_hh, w_out, b_out)


if __name__ == "__main__":
    # Caller-side opt-in to 64-bit so the final cast matches .to(torch.float64).
    jax.config.update("jax_enable_x64", True)

    # small shapes consistent with the module's forward:
    #   x: [batch=2, seq=8, num_feature=4], n_hidden=32, num_class=3 (-> softmax)
    # inter_num=0 (module default) -> no intermediate Linear/ReLU/Dropout layers.
    B, T, F, H, C = 2, 8, 4, 32, 3

    key = jax.random.PRNGKey(0)
    k_x, k_p = jax.random.split(key)
    x = jax.random.normal(k_x, (B, T, F), dtype=jnp.float32)
    params = init_params(k_p, num_feature=F, num_class=C, n_hidden=H)

    out = recurrent_nn_forward(x, params, num_class=C)
    out = jax.block_until_ready(out)

    assert out.shape == (B, T, C), out.shape
    assert out.dtype == jnp.float64, out.dtype
    # exact softmax -> rows sum to 1 up to f32 roundoff
    assert jnp.allclose(jnp.sum(out, axis=-1), 1.0, atol=1e-5)
    assert bool(jnp.all(out >= 0.0)) and bool(jnp.all(out <= 1.0))

    print("KERNEL_OK")
</pallas_src>

<mosaic_0001>
module attributes {stable_mosaic.version = 11 : i64} {
  func.func @kernel(%arg0: memref<64x4xbf16, #tpu.memory_space<vmem>>, %arg1: memref<4x128xbf16, #tpu.memory_space<vmem>>, %arg2: memref<32x128xbf16, #tpu.memory_space<vmem>>, %arg3: memref<1x128xf32, #tpu.memory_space<vmem>>, %arg4: memref<32x128xbf16, #tpu.memory_space<vmem>>, %arg5: memref<1x128xf32, #tpu.memory_space<vmem>>, %arg6: memref<64x128xf32, #tpu.memory_space<vmem>>) attributes {dimension_semantics = [], scalar_prefetch = 0 : i64, scratch_operands = 0 : i64, tpu.core_type = #tpu.core_type<tc>} {
    %c0 = arith.constant 0 : index
    %c0_0 = arith.constant 0 : index
    %0 = vector.load %arg0[%c0, %c0_0] : memref<64x4xbf16, #tpu.memory_space<vmem>>, vector<64x4xbf16>
    %c0_1 = arith.constant 0 : index
    %c0_2 = arith.constant 0 : index
    %1 = vector.load %arg1[%c0_1, %c0_2] : memref<4x128xbf16, #tpu.memory_space<vmem>>, vector<4x128xbf16>
    %cst = arith.constant dense<0.000000e+00> : vector<64x128xf32>
    %2 = tpu.matmul %0, %1, %cst {dimension_numbers = #tpu.dot_dimension_numbers<[1], [0], [0], [1], [0, 0, 1, 1], [], []>} : vector<64x4xbf16>, vector<4x128xbf16>, vector<64x128xf32> -> vector<64x128xf32>
    %c0_3 = arith.constant 0 : index
    %c0_4 = arith.constant 0 : index
    %3 = vector.load %arg3[%c0_3, %c0_4] : memref<1x128xf32, #tpu.memory_space<vmem>>, vector<1x128xf32>
    %4 = vector.broadcast %3 : vector<1x128xf32> to vector<64x128xf32>
    %5 = arith.addf %2, %4 : vector<64x128xf32>
    %c0_5 = arith.constant 0 : index
    %c0_6 = arith.constant 0 : index
    %6 = vector.load %arg2[%c0_5, %c0_6] : memref<32x128xbf16, #tpu.memory_space<vmem>>, vector<32x128xbf16>
    %cst_7 = arith.constant 0.000000e+00 : f32
    %7 = vector.broadcast %cst_7 : f32 to vector<8x32xf32>
    %8 = vector.extract_strided_slice %5 {offsets = [0, 0], sizes = [8, 128], strides = [1, 1]} : vector<64x128xf32> to vector<8x128xf32>
    %9 = vector.extract_strided_slice %8 {offsets = [0, 0], sizes = [8, 96], strides = [1, 1]} : vector<8x128xf32> to vector<8x96xf32>
    %10 = arith.negf %9 : vector<8x96xf32>
    %11 = math.exp %10 : vector<8x96xf32>
    %cst_8 = arith.constant 1.000000e+00 : f32
    %12 = vector.broadcast %cst_8 : f32 to vector<8x96xf32>
    %13 = arith.addf %12, %11 : vector<8x96xf32>
    %14 = arith.divf %12, %13 : vector<8x96xf32>
    %15 = vector.extract_strided_slice %8 {offsets = [0, 96], sizes = [8, 32], strides = [1, 1]} : vector<8x128xf32> to vector<8x32xf32>
    %16 = math.tanh %15 : vector<8x32xf32>
    %17 = vector.extract_strided_slice %14 {offsets = [0, 0], sizes = [8, 32], strides = [1, 1]} : vector<8x96xf32> to vector<8x32xf32>
    %18 = vector.extract_strided_slice %14 {offsets = [0, 32], sizes = [8, 32], strides = [1, 1]} : vector<8x96xf32> to vector<8x32xf32>
    %19 = vector.extract_strided_slice %14 {offsets = [0, 64], sizes = [8, 32], strides = [1, 1]} : vector<8x96xf32> to vector<8x32xf32>
    %20 = arith.mulf %18, %7 : vector<8x32xf32>
    %21 = arith.mulf %17, %16 : vector<8x32xf32>
    %22 = arith.addf %20, %21 : vector<8x32xf32>
    %23 = math.tanh %22 : vector<8x32xf32>
    %24 = arith.mulf %19, %23 : vector<8x32xf32>
    %25 = arith.truncf %24 : vector<8x32xf32> to vector<8x32xbf16>
    %26 = vector.extract_strided_slice %5 {offsets = [8, 0], sizes = [8, 128], strides = [1, 1]} : vector<64x128xf32> to vector<8x128xf32>
    %cst_9 = arith.constant dense<0.000000e+00> : vector<8x128xf32>
    %27 = tpu.matmul %25, %6, %cst_9 {dimension_numbers = #tpu.dot_dimension_numbers<[1], [0], [0], [1], [0, 0, 1, 1], [], []>} : vector<8x32xbf16>, vector<32x128xbf16>, vector<8x128xf32> -> vector<8x128xf32>
    %28 = arith.addf %26, %27 : vector<8x128xf32>
    %29 = vector.extract_strided_slice %28 {offsets = [0, 0], sizes = [8, 96], strides = [1, 1]} : vector<8x128xf32> to vector<8x96xf32>
    %30 = arith.negf %29 : vector<8x96xf32>
    %31 = math.exp %30 : vector<8x96xf32>
    %cst_10 = arith.constant 1.000000e+00 : f32
    %32 = vector.broadcast %cst_10 : f32 to vector<8x96xf32>
    %33 = arith.addf %32, %31 : vector<8x96xf32>
    %34 = arith.divf %32, %33 : vector<8x96xf32>
    %35 = vector.extract_strided_slice %28 {offsets = [0, 96], sizes = [8, 32], strides = [1, 1]} : vector<8x128xf32> to vector<8x32xf32>
    %36 = math.tanh %35 : vector<8x32xf32>
    %37 = vector.extract_strided_slice %34 {offsets = [0, 0], sizes = [8, 32], strides = [1, 1]} : vector<8x96xf32> to vector<8x32xf32>
    %38 = vector.extract_strided_slice %34 {offsets = [0, 32], sizes = [8, 32], strides = [1, 1]} : vector<8x96xf32> to vector<8x32xf32>
    %39 = vector.extract_strided_slice %34 {offsets = [0, 64], sizes = [8, 32], strides = [1, 1]} : vector<8x96xf32> to vector<8x32xf32>
    %40 = arith.mulf %38, %22 : vector<8x32xf32>
    %41 = arith.mulf %37, %36 : vector<8x32xf32>
    %42 = arith.addf %40, %41 : vector<8x32xf32>
    %43 = math.tanh %42 : vector<8x32xf32>
    %44 = arith.mulf %39, %43 : vector<8x32xf32>
    %45 = arith.truncf %44 : vector<8x32xf32> to vector<8x32xbf16>
    %46 = vector.extract_strided_slice %5 {offsets = [16, 0], sizes = [8, 128], strides = [1, 1]} : vector<64x128xf32> to vector<8x128xf32>
    %cst_11 = arith.constant dense<0.000000e+00> : vector<8x128xf32>
    %47 = tpu.matmul %45, %6, %cst_11 {dimension_numbers = #tpu.dot_dimension_numbers<[1], [0], [0], [1], [0, 0, 1, 1], [], []>} : vector<8x32xbf16>, vector<32x128xbf16>, vector<8x128xf32> -> vector<8x128xf32>
    %48 = arith.addf %46, %47 : vector<8x128xf32>
    %49 = vector.extract_strided_slice %48 {offsets = [0, 0], sizes = [8, 96], strides = [1, 1]} : vector<8x128xf32> to vector<8x96xf32>
    %50 = arith.negf %49 : vector<8x96xf32>
    %51 = math.exp %50 : vector<8x96xf32>
    %cst_12 = arith.constant 1.000000e+00 : f32
    %52 = vector.broadcast %cst_12 : f32 to vector<8x96xf32>
    %53 = arith.addf %52, %51 : vector<8x96xf32>
    %54 = arith.divf %52, %53 : vector<8x96xf32>
    %55 = vector.extract_strided_slice %48 {offsets = [0, 96], sizes = [8, 32], strides = [1, 1]} : vector<8x128xf32> to vector<8x32xf32>
    %56 = math.tanh %55 : vector<8x32xf32>
    %57 = vector.extract_strided_slice %54 {offsets = [0, 0], sizes = [8, 32], strides = [1, 1]} : vector<8x96xf32> to vector<8x32xf32>
    %58 = vector.extract_strided_slice %54 {offsets = [0, 32], sizes = [8, 32], strides = [1, 1]} : vector<8x96xf32> to vector<8x32xf32>
    %59 = vector.extract_strided_slice %54 {offsets = [0, 64], sizes = [8, 32], strides = [1, 1]} : vector<8x96xf32> to vector<8x32xf32>
    %60 = arith.mulf %58, %42 : vector<8x32xf32>
    %61 = arith.mulf %57, %56 : vector<8x32xf32>
    %62 = arith.addf %60, %61 : vector<8x32xf32>
    %63 = math.tanh %62 : vector<8x32xf32>
    %64 = arith.mulf %59, %63 : vector<8x32xf32>
    %65 = arith.truncf %64 : vector<8x32xf32> to vector<8x32xbf16>
    %66 = vector.extract_strided_slice %5 {offsets = [24, 0], sizes = [8, 128], strides = [1, 1]} : vector<64x128xf32> to vector<8x128xf32>
    %cst_13 = arith.constant dense<0.000000e+00> : vector<8x128xf32>
    %67 = tpu.matmul %65, %6, %cst_13 {dimension_numbers = #tpu.dot_dimension_numbers<[1], [0], [0], [1], [0, 0, 1, 1], [], []>} : vector<8x32xbf16>, vector<32x128xbf16>, vector<8x128xf32> -> vector<8x128xf32>
    %68 = arith.addf %66, %67 : vector<8x128xf32>
    %69 = vector.extract_strided_slice %68 {offsets = [0, 0], sizes = [8, 96], strides = [1, 1]} : vector<8x128xf32> to vector<8x96xf32>
    %70 = arith.negf %69 : vector<8x96xf32>
    %71 = math.exp %70 : vector<8x96xf32>
    %cst_14 = arith.constant 1.000000e+00 : f32
    %72 = vector.broadcast %cst_14 : f32 to vector<8x96xf32>
    %73 = arith.addf %72, %71 : vector<8x96xf32>
    %74 = arith.divf %72, %73 : vector<8x96xf32>
    %75 = vector.extract_strided_slice %68 {offsets = [0, 96], sizes = [8, 32], strides = [1, 1]} : vector<8x128xf32> to vector<8x32xf32>
    %76 = math.tanh %75 : vector<8x32xf32>
    %77 = vector.extract_strided_slice %74 {offsets = [0, 0], sizes = [8, 32], strides = [1, 1]} : vector<8x96xf32> to vector<8x32xf32>
    %78 = vector.extract_strided_slice %74 {offsets = [0, 32], sizes = [8, 32], strides = [1, 1]} : vector<8x96xf32> to vector<8x32xf32>
    %79 = vector.extract_strided_slice %74 {offsets = [0, 64], sizes = [8, 32], strides = [1, 1]} : vector<8x96xf32> to vector<8x32xf32>
    %80 = arith.mulf %78, %62 : vector<8x32xf32>
    %81 = arith.mulf %77, %76 : vector<8x32xf32>
    %82 = arith.addf %80, %81 : vector<8x32xf32>
    %83 = math.tanh %82 : vector<8x32xf32>
    %84 = arith.mulf %79, %83 : vector<8x32xf32>
    %85 = arith.truncf %84 : vector<8x32xf32> to vector<8x32xbf16>
    %86 = vector.extract_strided_slice %5 {offsets = [32, 0], sizes = [8, 128], strides = [1, 1]} : vector<64x128xf32> to vector<8x128xf32>
    %cst_15 = arith.constant dense<0.000000e+00> : vector<8x128xf32>
    %87 = tpu.matmul %85, %6, %cst_15 {dimension_numbers = #tpu.dot_dimension_numbers<[1], [0], [0], [1], [0, 0, 1, 1], [], []>} : vector<8x32xbf16>, vector<32x128xbf16>, vector<8x128xf32> -> vector<8x128xf32>
    %88 = arith.addf %86, %87 : vector<8x128xf32>
    %89 = vector.extract_strided_slice %88 {offsets = [0, 0], sizes = [8, 96], strides = [1, 1]} : vector<8x128xf32> to vector<8x96xf32>
    %90 = arith.negf %89 : vector<8x96xf32>
    %91 = math.exp %90 : vector<8x96xf32>
    %cst_16 = arith.constant 1.000000e+00 : f32
    %92 = vector.broadcast %cst_16 : f32 to vector<8x96xf32>
    %93 = arith.addf %92, %91 : vector<8x96xf32>
    %94 = arith.divf %92, %93 : vector<8x96xf32>
    %95 = vector.extract_strided_slice %88 {offsets = [0, 96], sizes = [8, 32], strides = [1, 1]} : vector<8x128xf32> to vector<8x32xf32>
    %96 = math.tanh %95 : vector<8x32xf32>
    %97 = vector.extract_strided_slice %94 {offsets = [0, 0], sizes = [8, 32], strides = [1, 1]} : vector<8x96xf32> to vector<8x32xf32>
    %98 = vector.extract_strided_slice %94 {offsets = [0, 32], sizes = [8, 32], strides = [1, 1]} : vector<8x96xf32> to vector<8x32xf32>
    %99 = vector.extract_strided_slice %94 {offsets = [0, 64], sizes = [8, 32], strides = [1, 1]} : vector<8x96xf32> to vector<8x32xf32>
    %100 = arith.mulf %98, %82 : vector<8x32xf32>
    %101 = arith.mulf %97, %96 : vector<8x32xf32>
    %102 = arith.addf %100, %101 : vector<8x32xf32>
    %103 = math.tanh %102 : vector<8x32xf32>
    %104 = arith.mulf %99, %103 : vector<8x32xf32>
    %105 = arith.truncf %104 : vector<8x32xf32> to vector<8x32xbf16>
    %106 = vector.extract_strided_slice %5 {offsets = [40, 0], sizes = [8, 128], strides = [1, 1]} : vector<64x128xf32> to vector<8x128xf32>
    %cst_17 = arith.constant dense<0.000000e+00> : vector<8x128xf32>
    %107 = tpu.matmul %105, %6, %cst_17 {dimension_numbers = #tpu.dot_dimension_numbers<[1], [0], [0], [1], [0, 0, 1, 1], [], []>} : vector<8x32xbf16>, vector<32x128xbf16>, vector<8x128xf32> -> vector<8x128xf32>
    %108 = arith.addf %106, %107 : vector<8x128xf32>
    %109 = vector.extract_strided_slice %108 {offsets = [0, 0], sizes = [8, 96], strides = [1, 1]} : vector<8x128xf32> to vector<8x96xf32>
    %110 = arith.negf %109 : vector<8x96xf32>
    %111 = math.exp %110 : vector<8x96xf32>
    %cst_18 = arith.constant 1.000000e+00 : f32
    %112 = vector.broadcast %cst_18 : f32 to vector<8x96xf32>
    %113 = arith.addf %112, %111 : vector<8x96xf32>
    %114 = arith.divf %112, %113 : vector<8x96xf32>
    %115 = vector.extract_strided_slice %108 {offsets = [0, 96], sizes = [8, 32], strides = [1, 1]} : vector<8x128xf32> to vector<8x32xf32>
    %116 = math.tanh %115 : vector<8x32xf32>
    %117 = vector.extract_strided_slice %114 {offsets = [0, 0], sizes = [8, 32], strides = [1, 1]} : vector<8x96xf32> to vector<8x32xf32>
    %118 = vector.extract_strided_slice %114 {offsets = [0, 32], sizes = [8, 32], strides = [1, 1]} : vector<8x96xf32> to vector<8x32xf32>
    %119 = vector.extract_strided_slice %114 {offsets = [0, 64], sizes = [8, 32], strides = [1, 1]} : vector<8x96xf32> to vector<8x32xf32>
    %120 = arith.mulf %118, %102 : vector<8x32xf32>
    %121 = arith.mulf %117, %116 : vector<8x32xf32>
    %122 = arith.addf %120, %121 : vector<8x32xf32>
    %123 = math.tanh %122 : vector<8x32xf32>
    %124 = arith.mulf %119, %123 : vector<8x32xf32>
    %125 = arith.truncf %124 : vector<8x32xf32> to vector<8x32xbf16>
    %126 = vector.extract_strided_slice %5 {offsets = [48, 0], sizes = [8, 128], strides = [1, 1]} : vector<64x128xf32> to vector<8x128xf32>
    %cst_19 = arith.constant dense<0.000000e+00> : vector<8x128xf32>
    %127 = tpu.matmul %125, %6, %cst_19 {dimension_numbers = #tpu.dot_dimension_numbers<[1], [0], [0], [1], [0, 0, 1, 1], [], []>} : vector<8x32xbf16>, vector<32x128xbf16>, vector<8x128xf32> -> vector<8x128xf32>
    %128 = arith.addf %126, %127 : vector<8x128xf32>
    %129 = vector.extract_strided_slice %128 {offsets = [0, 0], sizes = [8, 96], strides = [1, 1]} : vector<8x128xf32> to vector<8x96xf32>
    %130 = arith.negf %129 : vector<8x96xf32>
    %131 = math.exp %130 : vector<8x96xf32>
    %cst_20 = arith.constant 1.000000e+00 : f32
    %132 = vector.broadcast %cst_20 : f32 to vector<8x96xf32>
    %133 = arith.addf %132, %131 : vector<8x96xf32>
    %134 = arith.divf %132, %133 : vector<8x96xf32>
    %135 = vector.extract_strided_slice %128 {offsets = [0, 96], sizes = [8, 32], strides = [1, 1]} : vector<8x128xf32> to vector<8x32xf32>
    %136 = math.tanh %135 : vector<8x32xf32>
    %137 = vector.extract_strided_slice %134 {offsets = [0, 0], sizes = [8, 32], strides = [1, 1]} : vector<8x96xf32> to vector<8x32xf32>
    %138 = vector.extract_strided_slice %134 {offsets = [0, 32], sizes = [8, 32], strides = [1, 1]} : vector<8x96xf32> to vector<8x32xf32>
    %139 = vector.extract_strided_slice %134 {offsets = [0, 64], sizes = [8, 32], strides = [1, 1]} : vector<8x96xf32> to vector<8x32xf32>
    %140 = arith.mulf %138, %122 : vector<8x32xf32>
    %141 = arith.mulf %137, %136 : vector<8x32xf32>
    %142 = arith.addf %140, %141 : vector<8x32xf32>
    %143 = math.tanh %142 : vector<8x32xf32>
    %144 = arith.mulf %139, %143 : vector<8x32xf32>
    %145 = arith.truncf %144 : vector<8x32xf32> to vector<8x32xbf16>
    %146 = vector.extract_strided_slice %5 {offsets = [56, 0], sizes = [8, 128], strides = [1, 1]} : vector<64x128xf32> to vector<8x128xf32>
    %cst_21 = arith.constant dense<0.000000e+00> : vector<8x128xf32>
    %147 = tpu.matmul %145, %6, %cst_21 {dimension_numbers = #tpu.dot_dimension_numbers<[1], [0], [0], [1], [0, 0, 1, 1], [], []>} : vector<8x32xbf16>, vector<32x128xbf16>, vector<8x128xf32> -> vector<8x128xf32>
    %148 = arith.addf %146, %147 : vector<8x128xf32>
    %149 = vector.extract_strided_slice %148 {offsets = [0, 0], sizes = [8, 96], strides = [1, 1]} : vector<8x128xf32> to vector<8x96xf32>
    %150 = arith.negf %149 : vector<8x96xf32>
    %151 = math.exp %150 : vector<8x96xf32>
    %cst_22 = arith.constant 1.000000e+00 : f32
    %152 = vector.broadcast %cst_22 : f32 to vector<8x96xf32>
    %153 = arith.addf %152, %151 : vector<8x96xf32>
    %154 = arith.divf %152, %153 : vector<8x96xf32>
    %155 = vector.extract_strided_slice %148 {offsets = [0, 96], sizes = [8, 32], strides = [1, 1]} : vector<8x128xf32> to vector<8x32xf32>
    %156 = math.tanh %155 : vector<8x32xf32>
    %157 = vector.extract_strided_slice %154 {offsets = [0, 0], sizes = [8, 32], strides = [1, 1]} : vector<8x96xf32> to vector<8x32xf32>
    %158 = vector.extract_strided_slice %154 {offsets = [0, 32], sizes = [8, 32], strides = [1, 1]} : vector<8x96xf32> to vector<8x32xf32>
    %159 = vector.extract_strided_slice %154 {offsets = [0, 64], sizes = [8, 32], strides = [1, 1]} : vector<8x96xf32> to vector<8x32xf32>
    %160 = arith.mulf %158, %142 : vector<8x32xf32>
    %161 = arith.mulf %157, %156 : vector<8x32xf32>
    %162 = arith.addf %160, %161 : vector<8x32xf32>
    %163 = math.tanh %162 : vector<8x32xf32>
    %164 = arith.mulf %159, %163 : vector<8x32xf32>
    %165 = arith.truncf %164 : vector<8x32xf32> to vector<8x32xbf16>
    %166 = tpu.concatenate %25, %45, %65, %85, %105, %125, %145, %165 in 0 : vector<8x32xbf16>, vector<8x32xbf16>, vector<8x32xbf16>, vector<8x32xbf16>, vector<8x32xbf16>, vector<8x32xbf16>, vector<8x32xbf16>, vector<8x32xbf16> -> vector<64x32xbf16>
    %c0_23 = arith.constant 0 : index
    %c0_24 = arith.constant 0 : index
    %167 = vector.load %arg4[%c0_23, %c0_24] : memref<32x128xbf16, #tpu.memory_space<vmem>>, vector<32x128xbf16>
    %cst_25 = arith.constant dense<0.000000e+00> : vector<64x128xf32>
    %168 = tpu.matmul %166, %167, %cst_25 {dimension_numbers = #tpu.dot_dimension_numbers<[1], [0], [0], [1], [0, 0, 1, 1], [], []>} : vector<64x32xbf16>, vector<32x128xbf16>, vector<64x128xf32> -> vector<64x128xf32>
    %c0_26 = arith.constant 0 : index
    %c0_27 = arith.constant 0 : index
    %169 = vector.load %arg5[%c0_26, %c0_27] : memref<1x128xf32, #tpu.memory_space<vmem>>, vector<1x128xf32>
    %170 = vector.broadcast %169 : vector<1x128xf32> to vector<64x128xf32>
    %171 = arith.addf %168, %170 : vector<64x128xf32>
    %cst_28 = arith.constant dense<0xFF800000> : vector<64xf32>
    %172 = vector.multi_reduction <maximumf>, %171, %cst_28 [1] : vector<64x128xf32> to vector<64xf32>
    %173 = vector.shape_cast %172 : vector<64xf32> to vector<64x1xf32>
    %174 = vector.broadcast %173 : vector<64x1xf32> to vector<64x128xf32>
    %175 = arith.subf %171, %174 : vector<64x128xf32>
    %176 = math.exp %175 : vector<64x128xf32>
    %cst_29 = arith.constant dense<0.000000e+00> : vector<64xf32>
    %177 = vector.multi_reduction <add>, %176, %cst_29 [1] : vector<64x128xf32> to vector<64xf32>
    %178 = vector.shape_cast %177 : vector<64xf32> to vector<64x1xf32>
    %179 = vector.broadcast %178 : vector<64x1xf32> to vector<64x128xf32>
    %180 = arith.divf %176, %179 : vector<64x128xf32>
    %c0_30 = arith.constant 0 : index
    %c0_31 = arith.constant 0 : index
    %181 = vector.load %arg6[%c0_30, %c0_31] : memref<64x128xf32, #tpu.memory_space<vmem>>, vector<64x128xf32>
    tpu.vector_store %arg6[%c0_30, %c0_31], %180 {strides = array<i32>} : memref<64x128xf32, #tpu.memory_space<vmem>>, vector<64x128xf32>,
    return
  }
}

</mosaic_0001>

<llo_original>
// kernel: tpu_custom_call.1
$region0: #{tpu_custom_call.1}
  #allocation0 [shape = 'u32[]', space=smem, size = 0x4, offset = 0x4, fixed_abs, tag = 'smem constant byte address 0x4 - core index']
  #allocation1 [shape = 'u32[144,128]{1,0:T(1,128)}', space=vmem, size = 0x12000, scoped, tag = 'internal scratch']
  %s0 = inlined_call_operand.vmem [shape: bf16[64,4], index: 0, kind: input, shape index: {}]
  %s1 = inlined_call_operand.vmem [shape: bf16[4,128], index: 1, kind: input, shape index: {}]
  %s2 = inlined_call_operand.vmem [shape: bf16[32,128], index: 2, kind: input, shape index: {}]
  %s3 = inlined_call_operand.vmem [shape: f32[1,128], index: 3, kind: input, shape index: {}]
  %s4 = inlined_call_operand.vmem [shape: bf16[32,128], index: 4, kind: input, shape index: {}]
  %s5 = inlined_call_operand.vmem [shape: f32[1,128], index: 5, kind: input, shape index: {}]
  %s6 = inlined_call_operand.hbm [shape: f32[64,128], index: 6, kind: output, shape index: {}]
  %s7 = sld [smem:[#allocation0]]
  $region34: #{tpu_custom_call.1} parent=0
    _
  %s9 = ssub.s32 1, %s7
  %s10 = scalar_select 0, %s9, %s7
  $region1: #{tpu_custom_call.1} parent=0
    #allocation2 [shape = 'u8[32768]{0}', space=vmem, size = 0x8000, scoped, tag = 'output window, operand 0, single buffered']
    #allocation3 [shape = 's32[1]{0}', space=sflag, size = 0x4, scoped, tag = 'scoped memory for tpu_custom_call.1']
    %11 = vsyncpa [#allocation3], 0
    // Predicated region
    $region2: #{tpu_custom_call.1} parent=1 // pred_check
      _
    $region3: #{tpu_custom_call.1} parent=1 // pred_check_branch
      %13 = sbr.rel (0) target = $region5
    $region4: #{tpu_custom_call.1} parent=1 // pred_region
      _
    $region5: #{tpu_custom_call.1} parent=1 // pred_fallthru
      _
    // Predicated region
    $region6: #{tpu_custom_call.1} parent=1 // pred_check
      _
    $region7: #{tpu_custom_call.1} parent=1 // pred_check_branch
      %15 = sbr.rel (0) target = $region9
    $region8: #{tpu_custom_call.1} parent=1 // pred_region
      _
    $region9: #{tpu_custom_call.1} parent=1 // pred_fallthru
      _
    // Predicated region
    $region10: #{tpu_custom_call.1} parent=1 // pred_check
      _
    $region11: #{tpu_custom_call.1} parent=1 // pred_check_branch
      %17 = sbr.rel (0) target = $region13
    $region12: #{tpu_custom_call.1} parent=1 // pred_region
      _
    $region13: #{tpu_custom_call.1} parent=1 // pred_fallthru
      _
    // Predicated region
    $region14: #{tpu_custom_call.1} parent=1 // pred_check
      _
    $region15: #{tpu_custom_call.1} parent=1 // pred_check_branch
      %19 = sbr.rel (0) target = $region17
    $region16: #{tpu_custom_call.1} parent=1 // pred_region
      _
    $region17: #{tpu_custom_call.1} parent=1 // pred_fallthru
      _
    // Predicated region
    $region18: #{tpu_custom_call.1} parent=1 // pred_check
      _
    $region19: #{tpu_custom_call.1} parent=1 // pred_check_branch
      %21 = sbr.rel (0) target = $region21
    $region20: #{tpu_custom_call.1} parent=1 // pred_region
      _
    $region21: #{tpu_custom_call.1} parent=1 // pred_fallthru
      _
    // Predicated region
    $region22: #{tpu_custom_call.1} parent=1 // pred_check
      _
    $region23: #{tpu_custom_call.1} parent=1 // pred_check_branch
      %23 = sbr.rel (0) target = $region25
    $region24: #{tpu_custom_call.1} parent=1 // pred_region
      _
    $region25: #{tpu_custom_call.1} parent=1 // pred_fallthru
      _
    %v25 = vld [vmem:[%s0] sm:$0xf]
    %v26 = vld [vmem:[%s0 + $0x4] sm:$0xf]
    %v27 = vld [vmem:[%s0 + $0x8] sm:$0xf]
    %v28 = vld [vmem:[%s0 + $0xc] sm:$0xf]
    %v29 = vld [vmem:[%s0 + $0x10] sm:$0xf]
    %v30 = vld [vmem:[%s0 + $0x14] sm:$0xf]
    %v31 = vld [vmem:[%s0 + $0x18] sm:$0xf]
    %v32 = vld [vmem:[%s0 + $0x1c] sm:$0xf]
    %v33 = vld [vmem:[%s1] sm:$0x3]
    %v34 = vld [vmem:[%s3] sm:$0x1]
    %v36 = vlaneseq
    %v37 = vshrl.u32 %v36, 7
    %v38 = vsub.s32 0, %v37
    %v39 = vrot.slane %v34, %v38
    %v49 = vunpack.c.l.b16 %v25
    %v50 = vunpack.c.l.b16 %v26
    %v51 = vunpack.c.l.b16 %v27
    %v52 = vunpack.c.l.b16 %v28
    %v53 = vunpack.c.l.b16 %v29
    %v54 = vunpack.c.l.b16 %v30
    %v55 = vunpack.c.l.b16 %v31
    %v56 = vunpack.c.l.b16 %v32
    %v57 = vpack.c.b16 %v50, %v49
    %v58 = vpack.c.b16 %v52, %v51
    %v59 = vpack.c.b16 %v54, %v53
    %v60 = vpack.c.b16 %v56, %v55
    %vm61 = vcmask 31744
    %v63 = vsel %vm61, %v57, 0
    %v66 = vsel %vm61, %v58, 0
    %v69 = vsel %vm61, %v59, 0
    %v72 = vsel %vm61, %v60, 0
    %vm74 = vcmask 1041408
    %v76 = vsel %vm74, %v33, 0
    %78 = vmatprep.subr.bf16.mxu0 0
    %79 = vmatpush1.bf16.msra.mxu0 %v76
    %80 = vmatprep.subr.bf16.mxu0 0
    %81 = vmatpush1.bf16.msra.mxu0 0
    %82 = vmatprep.subr.bf16.mxu0 0
    %83 = vmatpush1.bf16.msra.mxu0 0
    %84 = vmatprep.subr.bf16.mxu0 0
    %85 = vmatpush1.bf16.msra.mxu0 0
    %86 = vmatprep.subr.bf16.mxu0 0
    %87 = vmatpush1.bf16.msra.mxu0 0
    %88 = vmatprep.subr.bf16.mxu0 0
    %89 = vmatpush1.bf16.msra.mxu0 0
    %90 = vmatprep.subr.bf16.mxu0 0
    %91 = vmatpush1.bf16.msra.mxu0 0
    %92 = vmatprep.subr.bf16.mxu0 0
    %93 = vmatpush1.bf16.msra.mxu0 0
    %94 = vmatprep.subr.bf16.mxu0 0
    %95 = vmatpush1.bf16.msra.mxu0 0
    %96 = vmatprep.subr.bf16.mxu0 0
    %97 = vmatpush1.bf16.msra.mxu0 0
    %98 = vmatprep.subr.bf16.mxu0 0
    %99 = vmatpush1.bf16.msra.mxu0 0
    %100 = vmatprep.subr.bf16.mxu0 0
    %101 = vmatpush1.bf16.msra.mxu0 0
    %102 = vmatprep.subr.bf16.mxu0 0
    %103 = vmatpush1.bf16.msra.mxu0 0
    %104 = vmatprep.subr.bf16.mxu0 0
    %105 = vmatpush1.bf16.msra.mxu0 0
    %106 = vmatprep.subr.bf16.mxu0 0
    %107 = vmatpush1.bf16.msra.mxu0 0
    %108 = vmatprep.subr.bf16.mxu0 0
    %109 = vmatpush1.bf16.msra.mxu0 0
    %110 = vmatprep.mubr.bf16.mxu0 0
    %111 = vmatmul.mubr.bf16.gmra.mrb[0].mxu0 %v63
    %v112 = vpop.f32.mrb[0].mxu0
    %v113 = vadd.f32 %v39, %v112
    %v114 = vpop.f32.mrb[0].mxu0
    %v115 = vpop.f32.mrb[0].mxu0
    %v116 = vadd.f32 %v39, %v115
    %v117 = vpop.f32.mrb[0].mxu0
    %118 = vmatprep.mubr.bf16.mxu0 0
    %119 = vmatmul.mubr.bf16.gmra.mrb[0].mxu0 %v66
    %v120 = vpop.f32.mrb[0].mxu0
    %v121 = vadd.f32 %v39, %v120
    %v122 = vpop.f32.mrb[0].mxu0
    %v123 = vpop.f32.mrb[0].mxu0
    %v124 = vadd.f32 %v39, %v123
    %v125 = vpop.f32.mrb[0].mxu0
    %126 = vmatprep.mubr.bf16.mxu0 0
    %127 = vmatmul.mubr.bf16.gmra.mrb[0].mxu0 %v69
    %v128 = vpop.f32.mrb[0].mxu0
    %v129 = vadd.f32 %v39, %v128
    %v130 = vpop.f32.mrb[0].mxu0
    %v131 = vpop.f32.mrb[0].mxu0
    %v132 = vadd.f32 %v39, %v131
    %v133 = vpop.f32.mrb[0].mxu0
    %134 = vmatprep.mubr.bf16.mxu0 0
    %135 = vmatmul.mubr.bf16.gmra.mrb[0].mxu0 %v72
    %v136 = vpop.f32.mrb[0].mxu0
    %v137 = vadd.f32 %v39, %v136
    %v138 = vpop.f32.mrb[0].mxu0
    %v139 = vpop.f32.mrb[0].mxu0
    %v140 = vadd.f32 %v39, %v139
    %v141 = vpop.f32.mrb[0].mxu0
    %142 = vdwg.mxu0
    %v143 = vld [vmem:[%s2] sm:$0xf]
    %v144 = vld [vmem:[%s2 + $0x4] sm:$0xf]
    %v145 = vld [vmem:[%s2 + $0x8] sm:$0xf]
    %v146 = vld [vmem:[%s2 + $0xc] sm:$0xf]
    %v147 = vxor.u32 %v113, 2147483648
    %v148 = vmul.f32 %v147, 1.442695
    %v149 = vpow.pop %v148
    %v150 = vadd.f32 %v149, 1.0
    %v151 = vrcp.pop %v150
    %v152 = vmul.f32 1.0, %v151
    %v153 = vtanh.pop %v113
    %v154 = vmul.f32 %v152, 0.0
    %156 = vrot.lane.b32.xlu0 %v153, 32
    %v157 = vpop.permute.xlu0 %156
    %v159 = vmul.f32 %v152, %v157
    %161 = vrot.lane.b32.xlu0 %v159, 32
    %v162 = vpop.permute.xlu0 %161
    %v164 = vadd.f32 %v154, %v162
    %v165 = vtanh.pop %v164
    %167 = vrot.lane.b32.xlu0 %v165, 32
    %v168 = vpop.permute.xlu0 %167
    %v170 = vmul.f32 %v152, %v168
    %v171 = vpack.c.bf16 %v170, %v170
    %173 = vrot.lane.b32.xlu0 %v171, 64
    %v174 = vpop.permute.xlu0 %173
    %v179 = vunpack.c.l.b16 %v143
    %v180 = vunpack.c.l.b16 %v144
    %v181 = vunpack.c.l.b16 %v145
    %v182 = vunpack.c.l.b16 %v146
    %v183 = vpack.c.b16 %v180, %v179
    %v184 = vpack.c.b16 %v182, %v181
    %vm187 = vcmask 261120
    %v189 = vsel %vm187, %v174, 0
    %191 = vmatprep.subr.bf16.mxu0 0
    %192 = vmatpush1.bf16.msra.mxu0 %v183
    %193 = vmatprep.subr.bf16.mxu0 0
    %194 = vmatpush1.bf16.msra.mxu0 %v184
    %195 = vmatprep.subr.bf16.mxu0 0
    %196 = vmatpush1.bf16.msra.mxu0 0
    %197 = vmatprep.subr.bf16.mxu0 0
    %198 = vmatpush1.bf16.msra.mxu0 0
    %199 = vmatprep.subr.bf16.mxu0 0
    %200 = vmatpush1.bf16.msra.mxu0 0
    %201 = vmatprep.subr.bf16.mxu0 0
    %202 = vmatpush1.bf16.msra.mxu0 0
    %203 = vmatprep.subr.bf16.mxu0 0
    %204 = vmatpush1.bf16.msra.mxu0 0
    %205 = vmatprep.subr.bf16.mxu0 0
    %206 = vmatpush1.bf16.msra.mxu0 0
    %207 = vmatprep.subr.bf16.mxu0 0
    %208 = vmatpush1.bf16.msra.mxu0 0
    %209 = vmatprep.subr.bf16.mxu0 0
    %210 = vmatpush1.bf16.msra.mxu0 0
    %211 = vmatprep.subr.bf16.mxu0 0
    %212 = vmatpush1.bf16.msra.mxu0 0
    %213 = vmatprep.subr.bf16.mxu0 0
    %214 = vmatpush1.bf16.msra.mxu0 0
    %215 = vmatprep.subr.bf16.mxu0 0
    %216 = vmatpush1.bf16.msra.mxu0 0
    %217 = vmatprep.subr.bf16.mxu0 0
    %218 = vmatpush1.bf16.msra.mxu0 0
    %219 = vmatprep.subr.bf16.mxu0 0
    %220 = vmatpush1.bf16.msra.mxu0 0
    %221 = vmatprep.subr.bf16.mxu0 0
    %222 = vmatpush1.bf16.msra.mxu0 0
    %223 = vmatprep.mubr.bf16.mxu0 0
    %224 = vmatmul.mubr.bf16.gmra.mrb[0].mxu0 %v189
    %v225 = vpop.f32.mrb[0].mxu0
    %v226 = vadd.f32 0.0, %v225
    %v227 = vpop.f32.mrb[0].mxu0
    %v228 = vpop.f32.mrb[0].mxu0
    %v229 = vpop.f32.mrb[0].mxu0
    %230 = vdwg.mxu0
    %v231 = vadd.f32 %v116, %v226
    %v232 = vxor.u32 %v231, 2147483648
    %v233 = vmul.f32 %v232, 1.442695
    %v234 = vpow.pop %v233
    %v235 = vadd.f32 %v234, 1.0
    %v236 = vrcp.pop %v235
    %v237 = vmul.f32 1.0, %v236
    %v238 = vtanh.pop %v231
    %v239 = vmul.f32 %v237, %v164
    %241 = vrot.lane.b32.xlu0 %v238, 32
    %v242 = vpop.permute.xlu0 %241
    %v244 = vmul.f32 %v237, %v242
    %246 = vrot.lane.b32.xlu0 %v244, 32
    %v247 = vpop.permute.xlu0 %246
    %v249 = vadd.f32 %v239, %v247
    %v250 = vtanh.pop %v249
    %252 = vrot.lane.b32.xlu0 %v250, 32
    %v253 = vpop.permute.xlu0 %252
    %v255 = vmul.f32 %v237, %v253
    %v256 = vpack.c.bf16 %v255, %v255
    %258 = vrot.lane.b32.xlu0 %v256, 64
    %v259 = vpop.permute.xlu0 %258
    %v261 = vsel %vm187, %v259, 0
    %263 = vmatprep.subr.bf16.mxu0 0
    %264 = vmatpush1.bf16.msra.mxu0 %v183
    %265 = vmatprep.subr.bf16.mxu0 0
    %266 = vmatpush1.bf16.msra.mxu0 %v184
    %267 = vmatprep.subr.bf16.mxu0 0
    %268 = vmatpush1.bf16.msra.mxu0 0
    %269 = vmatprep.subr.bf16.mxu0 0
    %270 = vmatpush1.bf16.msra.mxu0 0
    %271 = vmatprep.subr.bf16.mxu0 0
    %272 = vmatpush1.bf16.msra.mxu0 0
    %273 = vmatprep.subr.bf16.mxu0 0
    %274 = vmatpush1.bf16.msra.mxu0 0
    %275 = vmatprep.subr.bf16.mxu0 0
    %276 = vmatpush1.bf16.msra.mxu0 0
    %277 = vmatprep.subr.bf16.mxu0 0
    %278 = vmatpush1.bf16.msra.mxu0 0
    %279 = vmatprep.subr.bf16.mxu0 0
    %280 = vmatpush1.bf16.msra.mxu0 0
    %281 = vmatprep.subr.bf16.mxu0 0
    %282 = vmatpush1.bf16.msra.mxu0 0
    %283 = vmatprep.subr.bf16.mxu0 0
    %284 = vmatpush1.bf16.msra.mxu0 0
    %285 = vmatprep.subr.bf16.mxu0 0
    %286 = vmatpush1.bf16.msra.mxu0 0
    %287 = vmatprep.subr.bf16.mxu0 0
    %288 = vmatpush1.bf16.msra.mxu0 0
    %289 = vmatprep.subr.bf16.mxu0 0
    %290 = vmatpush1.bf16.msra.mxu0 0
    %291 = vmatprep.subr.bf16.mxu0 0
    %292 = vmatpush1.bf16.msra.mxu0 0
    %293 = vmatprep.subr.bf16.mxu0 0
    %294 = vmatpush1.bf16.msra.mxu0 0
    %295 = vmatprep.mubr.bf16.mxu0 0
    %296 = vmatmul.mubr.bf16.gmra.mrb[0].mxu0 %v261
    %v297 = vpop.f32.mrb[0].mxu0
    %v298 = vadd.f32 0.0, %v297
    %v299 = vpop.f32.mrb[0].mxu0
    %v300 = vpop.f32.mrb[0].mxu0
    %v301 = vpop.f32.mrb[0].mxu0
    %302 = vdwg.mxu0
    %v303 = vadd.f32 %v121, %v298
    %v304 = vxor.u32 %v303, 2147483648
    %v305 = vmul.f32 %v304, 1.442695
    %v306 = vpow.pop %v305
    %v307 = vadd.f32 %v306, 1.0
    %v308 = vrcp.pop %v307
    %v309 = vmul.f32 1.0, %v308
    %v310 = vtanh.pop %v303
    %v311 = vmul.f32 %v309, %v249
    %313 = vrot.lane.b32.xlu0 %v310, 32
    %v314 = vpop.permute.xlu0 %313
    %v316 = vmul.f32 %v309, %v314
    %318 = vrot.lane.b32.xlu0 %v316, 32
    %v319 = vpop.permute.xlu0 %318
    %v321 = vadd.f32 %v311, %v319
    %v322 = vtanh.pop %v321
    %324 = vrot.lane.b32.xlu0 %v322, 32
    %v325 = vpop.permute.xlu0 %324
    %v327 = vmul.f32 %v309, %v325
    %v328 = vpack.c.bf16 %v327, %v327
    %330 = vrot.lane.b32.xlu0 %v328, 64
    %v331 = vpop.permute.xlu0 %330
    %v333 = vsel %vm187, %v331, 0
    %335 = vmatprep.subr.bf16.mxu0 0
    %336 = vmatpush1.bf16.msra.mxu0 %v183
    %337 = vmatprep.subr.bf16.mxu0 0
    %338 = vmatpush1.bf16.msra.mxu0 %v184
    %339 = vmatprep.subr.bf16.mxu0 0
    %340 = vmatpush1.bf16.msra.mxu0 0
    %341 = vmatprep.subr.bf16.mxu0 0
    %342 = vmatpush1.bf16.msra.mxu0 0
    %343 = vmatprep.subr.bf16.mxu0 0
    %344 = vmatpush1.bf16.msra.mxu0 0
    %345 = vmatprep.subr.bf16.mxu0 0
    %346 = vmatpush1.bf16.msra.mxu0 0
    %347 = vmatprep.subr.bf16.mxu0 0
    %348 = vmatpush1.bf16.msra.mxu0 0
    %349 = vmatprep.subr.bf16.mxu0 0
    %350 = vmatpush1.bf16.msra.mxu0 0
    %351 = vmatprep.subr.bf16.mxu0 0
    %352 = vmatpush1.bf16.msra.mxu0 0
    %353 = vmatprep.subr.bf16.mxu0 0
    %354 = vmatpush1.bf16.msra.mxu0 0
    %355 = vmatprep.subr.bf16.mxu0 0
    %356 = vmatpush1.bf16.msra.mxu0 0
    %357 = vmatprep.subr.bf16.mxu0 0
    %358 = vmatpush1.bf16.msra.mxu0 0
    %359 = vmatprep.subr.bf16.mxu0 0
    %360 = vmatpush1.bf16.msra.mxu0 0
    %361 = vmatprep.subr.bf16.mxu0 0
    %362 = vmatpush1.bf16.msra.mxu0 0
    %363 = vmatprep.subr.bf16.mxu0 0
    %364 = vmatpush1.bf16.msra.mxu0 0
    %365 = vmatprep.subr.bf16.mxu0 0
    %366 = vmatpush1.bf16.msra.mxu0 0
    %367 = vmatprep.mubr.bf16.mxu0 0
    %368 = vmatmul.mubr.bf16.gmra.mrb[0].mxu0 %v333
    %v369 = vpop.f32.mrb[0].mxu0
    %v370 = vadd.f32 0.0, %v369
    %v371 = vpop.f32.mrb[0].mxu0
    %v372 = vpop.f32.mrb[0].mxu0
    %v373 = vpop.f32.mrb[0].mxu0
    %374 = vdwg.mxu0
    %v375 = vadd.f32 %v124, %v370
    %v376 = vxor.u32 %v375, 2147483648
    %v377 = vmul.f32 %v376, 1.442695
    %v378 = vpow.pop %v377
    %v379 = vadd.f32 %v378, 1.0
    %v380 = vrcp.pop %v379
    %v381 = vmul.f32 1.0, %v380
    %v382 = vtanh.pop %v375
    %v383 = vmul.f32 %v381, %v321
    %385 = vrot.lane.b32.xlu0 %v382, 32
    %v386 = vpop.permute.xlu0 %385
    %v388 = vmul.f32 %v381, %v386
    %390 = vrot.lane.b32.xlu0 %v388, 32
    %v391 = vpop.permute.xlu0 %390
    %v393 = vadd.f32 %v383, %v391
    %v394 = vtanh.pop %v393
    %396 = vrot.lane.b32.xlu0 %v394, 32
    %v397 = vpop.permute.xlu0 %396
    %v399 = vmul.f32 %v381, %v397
    %v400 = vpack.c.bf16 %v399, %v399
    %402 = vrot.lane.b32.xlu0 %v400, 64
    %v403 = vpop.permute.xlu0 %402
    %v405 = vsel %vm187, %v403, 0
    %407 = vmatprep.subr.bf16.mxu0 0
    %408 = vmatpush1.bf16.msra.mxu0 %v183
    %409 = vmatprep.subr.bf16.mxu0 0
    %410 = vmatpush1.bf16.msra.mxu0 %v184
    %411 = vmatprep.subr.bf16.mxu0 0
    %412 = vmatpush1.bf16.msra.mxu0 0
    %413 = vmatprep.subr.bf16.mxu0 0
    %414 = vmatpush1.bf16.msra.mxu0 0
    %415 = vmatprep.subr.bf16.mxu0 0
    %416 = vmatpush1.bf16.msra.mxu0 0
    %417 = vmatprep.subr.bf16.mxu0 0
    %418 = vmatpush1.bf16.msra.mxu0 0
    %419 = vmatprep.subr.bf16.mxu0 0
    %420 = vmatpush1.bf16.msra.mxu0 0
    %421 = vmatprep.subr.bf16.mxu0 0
    %422 = vmatpush1.bf16.msra.mxu0 0
    %423 = vmatprep.subr.bf16.mxu0 0
    %424 = vmatpush1.bf16.msra.mxu0 0
    %425 = vmatprep.subr.bf16.mxu0 0
    %426 = vmatpush1.bf16.msra.mxu0 0
    %427 = vmatprep.subr.bf16.mxu0 0
    %428 = vmatpush1.bf16.msra.mxu0 0
    %429 = vmatprep.subr.bf16.mxu0 0
    %430 = vmatpush1.bf16.msra.mxu0 0
    %431 = vmatprep.subr.bf16.mxu0 0
    %432 = vmatpush1.bf16.msra.mxu0 0
    %433 = vmatprep.subr.bf16.mxu0 0
    %434 = vmatpush1.bf16.msra.mxu0 0
    %435 = vmatprep.subr.bf16.mxu0 0
    %436 = vmatpush1.bf16.msra.mxu0 0
    %437 = vmatprep.subr.bf16.mxu0 0
    %438 = vmatpush1.bf16.msra.mxu0 0
    %439 = vmatprep.mubr.bf16.mxu0 0
    %440 = vmatmul.mubr.bf16.gmra.mrb[0].mxu0 %v405
    %v441 = vpop.f32.mrb[0].mxu0
    %v442 = vadd.f32 0.0, %v441
    %v443 = vpop.f32.mrb[0].mxu0
    %v444 = vpop.f32.mrb[0].mxu0
    %v445 = vpop.f32.mrb[0].mxu0
    %446 = vdwg.mxu0
    %v447 = vadd.f32 %v129, %v442
    %v448 = vxor.u32 %v447, 2147483648
    %v449 = vmul.f32 %v448, 1.442695
    %v450 = vpow.pop %v449
    %v451 = vadd.f32 %v450, 1.0
    %v452 = vrcp.pop %v451
    %v453 = vmul.f32 1.0, %v452
    %v454 = vtanh.pop %v447
    %v455 = vmul.f32 %v453, %v393
    %457 = vrot.lane.b32.xlu0 %v454, 32
    %v458 = vpop.permute.xlu0 %457
    %v460 = vmul.f32 %v453, %v458
    %462 = vrot.lane.b32.xlu0 %v460, 32
    %v463 = vpop.permute.xlu0 %462
    %v465 = vadd.f32 %v455, %v463
    %v466 = vtanh.pop %v465
    %468 = vrot.lane.b32.xlu0 %v466, 32
    %v469 = vpop.permute.xlu0 %468
    %v471 = vmul.f32 %v453, %v469
    %v472 = vpack.c.bf16 %v471, %v471
    %474 = vrot.lane.b32.xlu0 %v472, 64
    %v475 = vpop.permute.xlu0 %474
    %v477 = vsel %vm187, %v475, 0
    %479 = vmatprep.subr.bf16.mxu0 0
    %480 = vmatpush1.bf16.msra.mxu0 %v183
    %481 = vmatprep.subr.bf16.mxu0 0
    %482 = vmatpush1.bf16.msra.mxu0 %v184
    %483 = vmatprep.subr.bf16.mxu0 0
    %484 = vmatpush1.bf16.msra.mxu0 0
    %485 = vmatprep.subr.bf16.mxu0 0
    %486 = vmatpush1.bf16.msra.mxu0 0
    %487 = vmatprep.subr.bf16.mxu0 0
    %488 = vmatpush1.bf16.msra.mxu0 0
    %489 = vmatprep.subr.bf16.mxu0 0
    %490 = vmatpush1.bf16.msra.mxu0 0
    %491 = vmatprep.subr.bf16.mxu0 0
    %492 = vmatpush1.bf16.msra.mxu0 0
    %493 = vmatprep.subr.bf16.mxu0 0
    %494 = vmatpush1.bf16.msra.mxu0 0
    %495 = vmatprep.subr.bf16.mxu0 0
    %496 = vmatpush1.bf16.msra.mxu0 0
    %497 = vmatprep.subr.bf16.mxu0 0
    %498 = vmatpush1.bf16.msra.mxu0 0
    %499 = vmatprep.subr.bf16.mxu0 0
    %500 = vmatpush1.bf16.msra.mxu0 0
    %501 = vmatprep.subr.bf16.mxu0 0
    %502 = vmatpush1.bf16.msra.mxu0 0
    %503 = vmatprep.subr.bf16.mxu0 0
    %504 = vmatpush1.bf16.msra.mxu0 0
    %505 = vmatprep.subr.bf16.mxu0 0
    %506 = vmatpush1.bf16.msra.mxu0 0
    %507 = vmatprep.subr.bf16.mxu0 0
    %508 = vmatpush1.bf16.msra.mxu0 0
    %509 = vmatprep.subr.bf16.mxu0 0
    %510 = vmatpush1.bf16.msra.mxu0 0
    %511 = vmatprep.mubr.bf16.mxu0 0
    %512 = vmatmul.mubr.bf16.gmra.mrb[0].mxu0 %v477
    %v513 = vpop.f32.mrb[0].mxu0
    %v514 = vadd.f32 0.0, %v513
    %v515 = vpop.f32.mrb[0].mxu0
    %v516 = vpop.f32.mrb[0].mxu0
    %v517 = vpop.f32.mrb[0].mxu0
    %518 = vdwg.mxu0
    %v519 = vadd.f32 %v132, %v514
    %v520 = vxor.u32 %v519, 2147483648
    %v521 = vmul.f32 %v520, 1.442695
    %v522 = vpow.pop %v521
    %v523 = vadd.f32 %v522, 1.0
    %v524 = vrcp.pop %v523
    %v525 = vmul.f32 1.0, %v524
    %v526 = vtanh.pop %v519
    %v527 = vmul.f32 %v525, %v465
    %529 = vrot.lane.b32.xlu0 %v526, 32
    %v530 = vpop.permute.xlu0 %529
    %v532 = vmul.f32 %v525, %v530
    %534 = vrot.lane.b32.xlu0 %v532, 32
    %v535 = vpop.permute.xlu0 %534
    %v537 = vadd.f32 %v527, %v535
    %v538 = vtanh.pop %v537
    %540 = vrot.lane.b32.xlu0 %v538, 32
    %v541 = vpop.permute.xlu0 %540
    %v543 = vmul.f32 %v525, %v541
    %v544 = vpack.c.bf16 %v543, %v543
    %546 = vrot.lane.b32.xlu0 %v544, 64
    %v547 = vpop.permute.xlu0 %546
    %v549 = vsel %vm187, %v547, 0
    %551 = vmatprep.subr.bf16.mxu0 0
    %552 = vmatpush1.bf16.msra.mxu0 %v183
    %553 = vmatprep.subr.bf16.mxu0 0
    %554 = vmatpush1.bf16.msra.mxu0 %v184
    %555 = vmatprep.subr.bf16.mxu0 0
    %556 = vmatpush1.bf16.msra.mxu0 0
    %557 = vmatprep.subr.bf16.mxu0 0
    %558 = vmatpush1.bf16.msra.mxu0 0
    %559 = vmatprep.subr.bf16.mxu0 0
    %560 = vmatpush1.bf16.msra.mxu0 0
    %561 = vmatprep.subr.bf16.mxu0 0
    %562 = vmatpush1.bf16.msra.mxu0 0
    %563 = vmatprep.subr.bf16.mxu0 0
    %564 = vmatpush1.bf16.msra.mxu0 0
    %565 = vmatprep.subr.bf16.mxu0 0
    %566 = vmatpush1.bf16.msra.mxu0 0
    %567 = vmatprep.subr.bf16.mxu0 0
    %568 = vmatpush1.bf16.msra.mxu0 0
    %569 = vmatprep.subr.bf16.mxu0 0
    %570 = vmatpush1.bf16.msra.mxu0 0
    %571 = vmatprep.subr.bf16.mxu0 0
    %572 = vmatpush1.bf16.msra.mxu0 0
    %573 = vmatprep.subr.bf16.mxu0 0
    %574 = vmatpush1.bf16.msra.mxu0 0
    %575 = vmatprep.subr.bf16.mxu0 0
    %576 = vmatpush1.bf16.msra.mxu0 0
    %577 = vmatprep.subr.bf16.mxu0 0
    %578 = vmatpush1.bf16.msra.mxu0 0
    %579 = vmatprep.subr.bf16.mxu0 0
    %580 = vmatpush1.bf16.msra.mxu0 0
    %581 = vmatprep.subr.bf16.mxu0 0
    %582 = vmatpush1.bf16.msra.mxu0 0
    %583 = vmatprep.mubr.bf16.mxu0 0
    %584 = vmatmul.mubr.bf16.gmra.mrb[0].mxu0 %v549
    %v585 = vpop.f32.mrb[0].mxu0
    %v586 = vadd.f32 0.0, %v585
    %v587 = vpop.f32.mrb[0].mxu0
    %v588 = vpop.f32.mrb[0].mxu0
    %v589 = vpop.f32.mrb[0].mxu0
    %590 = vdwg.mxu0
    %v591 = vadd.f32 %v137, %v586
    %v592 = vxor.u32 %v591, 2147483648
    %v593 = vmul.f32 %v592, 1.442695
    %v594 = vpow.pop %v593
    %v595 = vadd.f32 %v594, 1.0
    %v596 = vrcp.pop %v595
    %v597 = vmul.f32 1.0, %v596
    %v598 = vtanh.pop %v591
    %v599 = vmul.f32 %v597, %v537
    %601 = vrot.lane.b32.xlu0 %v598, 32
    %v602 = vpop.permute.xlu0 %601
    %v604 = vmul.f32 %v597, %v602
    %606 = vrot.lane.b32.xlu0 %v604, 32
    %v607 = vpop.permute.xlu0 %606
    %v609 = vadd.f32 %v599, %v607
    %v610 = vtanh.pop %v609
    %612 = vrot.lane.b32.xlu0 %v610, 32
    %v613 = vpop.permute.xlu0 %612
    %v615 = vmul.f32 %v597, %v613
    %v616 = vpack.c.bf16 %v615, %v615
    %618 = vrot.lane.b32.xlu0 %v616, 64
    %v619 = vpop.permute.xlu0 %618
    %v621 = vsel %vm187, %v619, 0
    %623 = vmatprep.subr.bf16.mxu0 0
    %624 = vmatpush1.bf16.msra.mxu0 %v183
    %625 = vmatprep.subr.bf16.mxu0 0
    %626 = vmatpush1.bf16.msra.mxu0 %v184
    %627 = vmatprep.subr.bf16.mxu0 0
    %628 = vmatpush1.bf16.msra.mxu0 0
    %629 = vmatprep.subr.bf16.mxu0 0
    %630 = vmatpush1.bf16.msra.mxu0 0
    %631 = vmatprep.subr.bf16.mxu0 0
    %632 = vmatpush1.bf16.msra.mxu0 0
    %633 = vmatprep.subr.bf16.mxu0 0
    %634 = vmatpush1.bf16.msra.mxu0 0
    %635 = vmatprep.subr.bf16.mxu0 0
    %636 = vmatpush1.bf16.msra.mxu0 0
    %637 = vmatprep.subr.bf16.mxu0 0
    %638 = vmatpush1.bf16.msra.mxu0 0
    %639 = vmatprep.subr.bf16.mxu0 0
    %640 = vmatpush1.bf16.msra.mxu0 0
    %641 = vmatprep.subr.bf16.mxu0 0
    %642 = vmatpush1.bf16.msra.mxu0 0
    %643 = vmatprep.subr.bf16.mxu0 0
    %644 = vmatpush1.bf16.msra.mxu0 0
    %645 = vmatprep.subr.bf16.mxu0 0
    %646 = vmatpush1.bf16.msra.mxu0 0
    %647 = vmatprep.subr.bf16.mxu0 0
    %648 = vmatpush1.bf16.msra.mxu0 0
    %649 = vmatprep.subr.bf16.mxu0 0
    %650 = vmatpush1.bf16.msra.mxu0 0
    %651 = vmatprep.subr.bf16.mxu0 0
    %652 = vmatpush1.bf16.msra.mxu0 0
    %653 = vmatprep.subr.bf16.mxu0 0
    %654 = vmatpush1.bf16.msra.mxu0 0
    %655 = vmatprep.mubr.bf16.mxu0 0
    %656 = vmatmul.mubr.bf16.gmra.mrb[0].mxu0 %v621
    %v657 = vpop.f32.mrb[0].mxu0
    %v658 = vadd.f32 0.0, %v657
    %v659 = vpop.f32.mrb[0].mxu0
    %v660 = vpop.f32.mrb[0].mxu0
    %v661 = vpop.f32.mrb[0].mxu0
    %662 = vdwg.mxu0
    %v663 = vadd.f32 %v140, %v658
    %v664 = vxor.u32 %v663, 2147483648
    %v665 = vmul.f32 %v664, 1.442695
    %v666 = vpow.pop %v665
    %v667 = vadd.f32 %v666, 1.0
    %v668 = vrcp.pop %v667
    %v669 = vmul.f32 1.0, %v668
    %v670 = vtanh.pop %v663
    %v671 = vmul.f32 %v669, %v609
    %673 = vrot.lane.b32.xlu0 %v670, 32
    %v674 = vpop.permute.xlu0 %673
    %v676 = vmul.f32 %v669, %v674
    %678 = vrot.lane.b32.xlu0 %v676, 32
    %v679 = vpop.permute.xlu0 %678
    %v681 = vadd.f32 %v671, %v679
    %v682 = vtanh.pop %v681
    %684 = vrot.lane.b32.xlu0 %v682, 32
    %v685 = vpop.permute.xlu0 %684
    %v687 = vmul.f32 %v669, %v685
    %v688 = vpack.c.bf16 %v687, %v687
    %v689 = vrot.slane %v256, 4
    %v690 = vrot.slane %v400, 4
    %v691 = vrot.slane %v544, 4
    %v693 = vrot.slane %v688, 4
    %vm694 = vcmask 1043456
    %v697 = vsel %vm694, %v171, %v689
    %v700 = vsel %vm694, %v328, %v690
    %v703 = vsel %vm694, %v472, %v691
    %v706 = vsel %vm694, %v616, %v693
    %v707 = vld [vmem:[%s4] sm:$0xf]
    %v708 = vld [vmem:[%s4 + $0x4] sm:$0xf]
    %v709 = vld [vmem:[%s4 + $0x8] sm:$0xf]
    %v710 = vld [vmem:[%s4 + $0xc] sm:$0xf]
    %v711 = vld [vmem:[%s5] sm:$0x1]
    %v713 = vlaneseq
    %v714 = vshrl.u32 %v713, 7
    %v715 = vsub.s32 0, %v714
    %v716 = vrot.slane %v711, %v715
    %722 = vrot.lane.b32.xlu0 %v697, 64
    %v723 = vpop.permute.xlu0 %722
    %724 = vrot.lane.b32.xlu0 %v700, 64
    %v725 = vpop.permute.xlu0 %724
    %726 = vrot.lane.b32.xlu0 %v703, 64
    %v727 = vpop.permute.xlu0 %726
    %728 = vrot.lane.b32.xlu0 %v706, 64
    %v729 = vpop.permute.xlu0 %728
    %v734 = vunpack.c.l.b16 %v707
    %v735 = vunpack.c.l.b16 %v708
    %v736 = vunpack.c.l.b16 %v709
    %v737 = vunpack.c.l.b16 %v710
    %v738 = vpack.c.b16 %v735, %v734
    %v739 = vpack.c.b16 %v737, %v736
    %v743 = vsel %vm187, %v723, 0
    %v746 = vsel %vm187, %v725, 0
    %v749 = vsel %vm187, %v727, 0
    %v752 = vsel %vm187, %v729, 0
    %754 = vmatprep.subr.bf16.mxu0 0
    %755 = vmatpush1.bf16.msra.mxu0 %v738
    %756 = vmatprep.subr.bf16.mxu0 0
    %757 = vmatpush1.bf16.msra.mxu0 %v739
    %758 = vmatprep.subr.bf16.mxu0 0
    %759 = vmatpush1.bf16.msra.mxu0 0
    %760 = vmatprep.subr.bf16.mxu0 0
    %761 = vmatpush1.bf16.msra.mxu0 0
    %762 = vmatprep.subr.bf16.mxu0 0
    %763 = vmatpush1.bf16.msra.mxu0 0
    %764 = vmatprep.subr.bf16.mxu0 0
    %765 = vmatpush1.bf16.msra.mxu0 0
    %766 = vmatprep.subr.bf16.mxu0 0
    %767 = vmatpush1.bf16.msra.mxu0 0
    %768 = vmatprep.subr.bf16.mxu0 0
    %769 = vmatpush1.bf16.msra.mxu0 0
    %770 = vmatprep.subr.bf16.mxu0 0
    %771 = vmatpush1.bf16.msra.mxu0 0
    %772 = vmatprep.subr.bf16.mxu0 0
    %773 = vmatpush1.bf16.msra.mxu0 0
    %774 = vmatprep.subr.bf16.mxu0 0
    %775 = vmatpush1.bf16.msra.mxu0 0
    %776 = vmatprep.subr.bf16.mxu0 0
    %777 = vmatpush1.bf16.msra.mxu0 0
    %778 = vmatprep.subr.bf16.mxu0 0
    %779 = vmatpush1.bf16.msra.mxu0 0
    %780 = vmatprep.subr.bf16.mxu0 0
    %781 = vmatpush1.bf16.msra.mxu0 0
    %782 = vmatprep.subr.bf16.mxu0 0
    %783 = vmatpush1.bf16.msra.mxu0 0
    %784 = vmatprep.subr.bf16.mxu0 0
    %785 = vmatpush1.bf16.msra.mxu0 0
    %786 = vmatprep.mubr.bf16.mxu0 0
    %787 = vmatmul.mubr.bf16.gmra.mrb[0].mxu0 %v743
    %v788 = vpop.f32.mrb[0].mxu0
    %v789 = vadd.f32 %v716, %v788
    %v790 = vpop.f32.mrb[0].mxu0
    %v791 = vpop.f32.mrb[0].mxu0
    %v792 = vadd.f32 %v716, %v791
    %v793 = vpop.f32.mrb[0].mxu0
    %794 = vmatprep.mubr.bf16.mxu0 0
    %795 = vmatmul.mubr.bf16.gmra.mrb[0].mxu0 %v746
    %v796 = vpop.f32.mrb[0].mxu0
    %v797 = vadd.f32 %v716, %v796
    %v798 = vpop.f32.mrb[0].mxu0
    %v799 = vpop.f32.mrb[0].mxu0
    %v800 = vadd.f32 %v716, %v799
    %v801 = vpop.f32.mrb[0].mxu0
    %802 = vmatprep.mubr.bf16.mxu0 0
    %803 = vmatmul.mubr.bf16.gmra.mrb[0].mxu0 %v749
    %v804 = vpop.f32.mrb[0].mxu0
    %v805 = vadd.f32 %v716, %v804
    %v806 = vpop.f32.mrb[0].mxu0
    %v807 = vpop.f32.mrb[0].mxu0
    %v808 = vadd.f32 %v716, %v807
    %v809 = vpop.f32.mrb[0].mxu0
    %810 = vmatprep.mubr.bf16.mxu0 0
    %811 = vmatmul.mubr.bf16.gmra.mrb[0].mxu0 %v752
    %v812 = vpop.f32.mrb[0].mxu0
    %v813 = vadd.f32 %v716, %v812
    %v814 = vpop.f32.mrb[0].mxu0
    %v815 = vpop.f32.mrb[0].mxu0
    %v816 = vadd.f32 %v716, %v815
    %v817 = vpop.f32.mrb[0].mxu0
    %818 = vdwg.mxu0
    %819 = vmax.xlane.f32.xlu0 %v789
    %v820 = vpop.xlane.xlu0 %819
    %821 = vmax.xlane.f32.xlu0 %v792
    %v822 = vpop.xlane.xlu0 %821
    %823 = vmax.xlane.f32.xlu0 %v797
    %v824 = vpop.xlane.xlu0 %823
    %825 = vmax.xlane.f32.xlu0 %v800
    %v826 = vpop.xlane.xlu0 %825
    %827 = vmax.xlane.f32.xlu0 %v805
    %v828 = vpop.xlane.xlu0 %827
    %829 = vmax.xlane.f32.xlu0 %v808
    %v830 = vpop.xlane.xlu0 %829
    %831 = vmax.xlane.f32.xlu0 %v813
    %v832 = vpop.xlane.xlu0 %831
    %833 = vmax.xlane.f32.xlu0 %v816
    %v834 = vpop.xlane.xlu0 %833
    %v835 = vsub.f32 %v789, %v820
    %v836 = vsub.f32 %v792, %v822
    %v837 = vsub.f32 %v797, %v824
    %v838 = vsub.f32 %v800, %v826
    %v839 = vsub.f32 %v805, %v828
    %v840 = vsub.f32 %v808, %v830
    %v841 = vsub.f32 %v813, %v832
    %v842 = vsub.f32 %v816, %v834
    %v843 = vmul.f32 %v835, 1.442695
    %v844 = vpow.pop %v843
    %v845 = vmul.f32 %v836, 1.442695
    %v846 = vpow.pop %v845
    %v847 = vmul.f32 %v837, 1.442695
    %v848 = vpow.pop %v847
    %v849 = vmul.f32 %v838, 1.442695
    %v850 = vpow.pop %v849
    %v851 = vmul.f32 %v839, 1.442695
    %v852 = vpow.pop %v851
    %v853 = vmul.f32 %v840, 1.442695
    %v854 = vpow.pop %v853
    %v855 = vmul.f32 %v841, 1.442695
    %v856 = vpow.pop %v855
    %v857 = vmul.f32 %v842, 1.442695
    %v858 = vpow.pop %v857
    %859 = vadd.xlane.f32.xlu0 %v844
    %v860 = vpop.xlane.xlu0 %859
    %861 = vadd.xlane.f32.xlu0 %v846
    %v862 = vpop.xlane.xlu0 %861
    %863 = vadd.xlane.f32.xlu0 %v848
    %v864 = vpop.xlane.xlu0 %863
    %865 = vadd.xlane.f32.xlu0 %v850
    %v866 = vpop.xlane.xlu0 %865
    %867 = vadd.xlane.f32.xlu0 %v852
    %v868 = vpop.xlane.xlu0 %867
    %869 = vadd.xlane.f32.xlu0 %v854
    %v870 = vpop.xlane.xlu0 %869
    %871 = vadd.xlane.f32.xlu0 %v856
    %v872 = vpop.xlane.xlu0 %871
    %873 = vadd.xlane.f32.xlu0 %v858
    %v874 = vpop.xlane.xlu0 %873
    %v875 = vrcp.pop %v860
    %v876 = vmul.f32 %v844, %v875
    %v877 = vrcp.pop %v862
    %v878 = vmul.f32 %v846, %v877
    %v879 = vrcp.pop %v864
    %v880 = vmul.f32 %v848, %v879
    %v881 = vrcp.pop %v866
    %v882 = vmul.f32 %v850, %v881
    %v883 = vrcp.pop %v868
    %v884 = vmul.f32 %v852, %v883
    %v885 = vrcp.pop %v870
    %v886 = vmul.f32 %v854, %v885
    %v887 = vrcp.pop %v872
    %v888 = vmul.f32 %v856, %v887
    %v889 = vrcp.pop %v874
    %v890 = vmul.f32 %v858, %v889
    %891 = vst [vmem:[#allocation2] sm:$0xff] %v876
    %892 = vst [vmem:[#allocation2 + $0x8] sm:$0xff] %v878
    %893 = vst [vmem:[#allocation2 + $0x10] sm:$0xff] %v880
    %894 = vst [vmem:[#allocation2 + $0x18] sm:$0xff] %v882
    %895 = vst [vmem:[#allocation2 + $0x20] sm:$0xff] %v884
    %896 = vst [vmem:[#allocation2 + $0x28] sm:$0xff] %v886
    %897 = vst [vmem:[#allocation2 + $0x30] sm:$0xff] %v888
    %898 = vst [vmem:[#allocation2 + $0x38] sm:$0xff] %v890
    // Predicated region
    $region26: #{tpu_custom_call.1} parent=1 // pred_check
      _
    $region27: #{tpu_custom_call.1} parent=1 // pred_check_branch
      %900 = sbr.rel (0) target = $region29
    $region28: #{tpu_custom_call.1} parent=1 // pred_region
      %s902 = ssub.s32 1024, 1024
      %903 = vsyncadd [#allocation3], %s902
      %s904 = sshll.u32 [#allocation2], 4
      %s905 = int_to_ptr.vmem [resolvable:$true] %s904
      %910 = dma.vmem_to_hbm [thread:$0]  %s905, 1024, %s6, [#allocation3], 128, 128, 8
    $region29: #{tpu_custom_call.1} parent=1 // pred_fallthru
      _
    // Predicated region
    $region30: #{tpu_custom_call.1} parent=1 // pred_check
      _
    $region31: #{tpu_custom_call.1} parent=1 // pred_check_branch
      %912 = sbr.rel (0) target = $region33
    $region32: #{tpu_custom_call.1} parent=1 // pred_region
      %913 = dma.done [#allocation3], 1024
    $region33: #{tpu_custom_call.1} parent=1 // pred_fallthru
      _
    %914 = vsyncpa [#allocation3], 1

</llo_original>
